<compile_context>
chip_gen: v7x
topology: tpu7x:2x2x1
jax: 0.10.0
libtpu: 0.0.40
codegen_flags: <defaults>
</compile_context>

<pallas_src>
import functools

import jax
import jax.numpy as jnp
from jax.experimental import pallas as pl
from jax.experimental.pallas import tpu as pltpu


def _locked_dropout_kernel(u_ref, x_ref, o_ref, *, keep_prob):
    # u_ref: (tB, 1, H) uniform [0,1) f32;  x_ref / o_ref: (tB, tT, H) in x dtype.
    scale = jnp.asarray(1.0 / keep_prob, dtype=x_ref.dtype)
    zero = jnp.asarray(0.0, dtype=x_ref.dtype)
    mask = jnp.where(u_ref[...] < keep_prob, scale, zero)  # (tB, 1, H), x dtype
    o_ref[...] = x_ref[...] * mask                         # broadcast over T


def _pick_tiles(B, T, H, itemsize, target_bytes=2 * 1024 * 1024):
    """Pick (tB, tT) so each x block is ~target_bytes (safe on v5e/v6e/v7x)."""
    row_bytes = H * itemsize
    slab_bytes = T * row_bytes                      # one full (T, H) slab
    if slab_bytes <= target_bytes:
        # Small slabs: fuse several batch rows per grid step to amortize the
        # ~0.35 us fixed per-step overhead.
        tT = T
        tB = max(1, min(B, target_bytes // max(slab_bytes, 1)))
    else:
        # Large slabs: tile the time axis; tT a multiple of 8 (sublane) unless
        # it equals T (full-dim blocks are always legal).
        tB = 1
        tT = (target_bytes // row_bytes) // 8 * 8
        tT = min(T, max(tT, 8))
    return int(tB), int(tT)


def locked_dropout(x, seed, dropprob, *, training=True, batch_first=True,
                   donate_x=False):
    """LockedDropout forward. x: (B, T, H), batch_first=True."""
    if (not training) or dropprob == 0.0:
        return x
    if not batch_first:
        # TODO(synk): batch_first=False ((T, B, H) with a (1, B, H) mask shared
        # over axis 0) is the same kernel with the broadcast on axis 0; only the
        # batch_first=True path is wired up here.
        raise NotImplementedError("only batch_first=True is implemented")

    B, T, H = x.shape
    keep_prob = 1.0 - float(dropprob)
    itemsize = jnp.dtype(x.dtype).itemsize
    tB, tT = _pick_tiles(B, T, H, itemsize)

    # Random source for the locked (B, 1, H) mask — tiny next to the B*T*H
    # payload, so generating it outside the kernel costs ~nothing.
    u = jax.random.uniform(jax.random.PRNGKey(seed), (B, 1, H), dtype=jnp.float32)

    kernel = functools.partial(_locked_dropout_kernel, keep_prob=keep_prob)
    grid = (pl.cdiv(B, tB), pl.cdiv(T, tT))

    return pl.pallas_call(
        kernel,
        out_shape=jax.ShapeDtypeStruct(x.shape, x.dtype),
        grid=grid,
        in_specs=[
            pl.BlockSpec((tB, 1, H), lambda b, t: (b, 0, 0)),    # mask source
            pl.BlockSpec((tB, tT, H), lambda b, t: (b, t, 0)),   # activations
        ],
        out_specs=pl.BlockSpec((tB, tT, H), lambda b, t: (b, t, 0)),
        compiler_params=pltpu.CompilerParams(
            dimension_semantics=("parallel", "parallel")),
        # Optional in-place update when the caller no longer needs x
        # (saves one activation-sized HBM allocation; no bandwidth change).
        input_output_aliases=({1: 0} if donate_x else {}),
    )(u, x)


if __name__ == "__main__":
    key = jax.random.PRNGKey(0)
    B, T, H = 2, 8, 128            # small demo shapes; H multiple of 128 (lanes)
    x = jax.random.normal(key, (B, T, H), dtype=jnp.float32)

    dropprob = 0.3
    seed = 1234
    out = jax.block_until_ready(
        locked_dropout(x, seed=seed, dropprob=dropprob, training=True))
    assert out.shape == x.shape and out.dtype == x.dtype

    # Reference: recompute the exact (B, 1, H) locked mask the wrapper uses and
    # apply it the PyTorch way (broadcast over T).  This also verifies the
    # "locked" property: the same per-(b, h) scale for every time step.
    keep_prob = 1.0 - dropprob
    u_ref = jax.random.uniform(jax.random.PRNGKey(seed), (B, 1, H),
                               dtype=jnp.float32)
    m_ref = jnp.where(u_ref < keep_prob, 1.0 / keep_prob, 0.0).astype(x.dtype)
    expected = x * m_ref
    assert bool(jnp.allclose(out, expected, atol=1e-6, rtol=1e-6))

    # Mask values are only 0 or 1/(1-p).
    assert bool(jnp.all((m_ref == 0.0) |
                        (jnp.abs(m_ref - 1.0 / keep_prob) < 1e-6)))

    # Eval mode / p == 0 passthrough.
    same = jax.block_until_ready(
        locked_dropout(x, seed, dropprob, training=False))
    assert bool(jnp.all(same == x))
    same2 = jax.block_until_ready(
        locked_dropout(x, seed, 0.0, training=True))
    assert bool(jnp.all(same2 == x))

    print("KERNEL_OK")
</pallas_src>

<mosaic_0001>
module attributes {stable_mosaic.version = 11 : i64} {
  func.func @_locked_dropout_kernel(%arg0: i32, %arg1: i32, %arg2: memref<2x1x128xf32, #tpu.memory_space<vmem>>, %arg3: memref<2x8x128xf32, #tpu.memory_space<vmem>>, %arg4: memref<2x8x128xf32, #tpu.memory_space<vmem>>) attributes {dimension_semantics = [#tpu.dimension_semantics<parallel>, #tpu.dimension_semantics<parallel>], iteration_bounds = array<i64: 1, 1>, scalar_prefetch = 0 : i64, scratch_operands = 0 : i64, tpu.core_type = #tpu.core_type<tc>, window_params = [{transform_indices = @transform_0, window_bounds = array<i64: 2, 1, 128>}, {transform_indices = @transform_1, window_bounds = array<i64: 2, 8, 128>}, {transform_indices = @transform_2, window_bounds = array<i64: 2, 8, 128>}]} {
    %c0 = arith.constant 0 : index
    %c0_0 = arith.constant 0 : index
    %c0_1 = arith.constant 0 : index
    %0 = vector.load %arg2[%c0, %c0_0, %c0_1] : memref<2x1x128xf32, #tpu.memory_space<vmem>>, vector<2x1x128xf32>
    %cst = arith.constant 0.699999988 : f32
    %1 = vector.broadcast %cst : f32 to vector<2x1x128xf32>
    %2 = arith.cmpf olt, %0, %1 : vector<2x1x128xf32>
    %cst_2 = arith.constant 1.42857146 : f32
    %cst_3 = arith.constant 0.000000e+00 : f32
    %3 = vector.broadcast %cst_2 : f32 to vector<2x1x128xf32>
    %4 = vector.broadcast %cst_3 : f32 to vector<2x1x128xf32>
    %5 = arith.select %2, %3, %4 : vector<2x1x128xi1>, vector<2x1x128xf32>
    %c0_4 = arith.constant 0 : index
    %c0_5 = arith.constant 0 : index
    %c0_6 = arith.constant 0 : index
    %6 = vector.load %arg3[%c0_4, %c0_5, %c0_6] : memref<2x8x128xf32, #tpu.memory_space<vmem>>, vector<2x8x128xf32>
    %7 = vector.broadcast %5 : vector<2x1x128xf32> to vector<2x8x128xf32>
    %8 = arith.mulf %6, %7 : vector<2x8x128xf32>
    %c0_7 = arith.constant 0 : index
    %c0_8 = arith.constant 0 : index
    %c0_9 = arith.constant 0 : index
    %9 = vector.load %arg4[%c0_7, %c0_8, %c0_9] : memref<2x8x128xf32, #tpu.memory_space<vmem>>, vector<2x8x128xf32>
    tpu.vector_store %arg4[%c0_7, %c0_8, %c0_9], %8 {strides = array<i32>} : memref<2x8x128xf32, #tpu.memory_space<vmem>>, vector<2x8x128xf32>,
    return
  }
  func.func @transform_0(%arg0: i32, %arg1: i32) -> (i32, i32, i32) {
    %c0_i32 = arith.constant 0 : i32
    %c0_i32_0 = arith.constant 0 : i32
    %c0_i32_1 = arith.constant 0 : i32
    return %arg0, %c0_i32, %c0_i32_0 : i32, i32, i32
  }
  func.func @transform_1(%arg0: i32, %arg1: i32) -> (i32, i32, i32) {
    %c0_i32 = arith.constant 0 : i32
    %c0_i32_0 = arith.constant 0 : i32
    return %arg0, %arg1, %c0_i32 : i32, i32, i32
  }
  func.func @transform_2(%arg0: i32, %arg1: i32) -> (i32, i32, i32) {
    %c0_i32 = arith.constant 0 : i32
    %c0_i32_0 = arith.constant 0 : i32
    return %arg0, %arg1, %c0_i32 : i32, i32, i32
  }
}

</mosaic_0001>

<llo_original>
// kernel: tpu_custom_call.1
$region0: #{tpu_custom_call.1}
  #allocation0 [shape = 'u32[]', space=smem, size = 0x4, offset = 0x4, fixed_abs, tag = 'smem constant byte address 0x4 - core index']
  #allocation1 [shape = 'u32[144,128]{1,0:T(1,128)}', space=vmem, size = 0x12000, scoped, tag = 'internal scratch']
  %s0 = inlined_call_operand.hbm [shape: f32[2,1,128], index: 0, kind: input, shape index: {}]
  %s1 = inlined_call_operand.hbm [shape: f32[2,8,128], index: 1, kind: input, shape index: {}]
  %s2 = inlined_call_operand.hbm [shape: f32[2,8,128], index: 2, kind: output, shape index: {}]
  %s3 = sld [smem:[#allocation0]]
  $region26: #{tpu_custom_call.1} parent=0
    _
  %s5 = ssub.s32 1, %s3
  %s6 = scalar_select 0, %s5, %s3
  $region1: #{tpu_custom_call.1} parent=0
    #allocation2 [shape = 'u8[1024]{0}', space=vmem, size = 0x400, scoped, tag = 'input window, operand 0, single buffered']
    #allocation3 [shape = 's32[1]{0}', space=sflag, size = 0x4, scoped, tag = 'scoped memory for tpu_custom_call.1']
    #allocation4 [shape = 's32[1]{0}', space=sflag, size = 0x4, scoped, tag = 'scoped memory for tpu_custom_call.1']
    #allocation5 [shape = 'u8[8192]{0}', space=vmem, size = 0x2000, scoped, tag = 'input window, operand 1, single buffered']
    #allocation6 [shape = 's32[1]{0}', space=sflag, size = 0x4, scoped, tag = 'scoped memory for tpu_custom_call.1']
    #allocation7 [shape = 'u8[8192]{0}', space=vmem, size = 0x2000, scoped, tag = 'output window, operand 0, single buffered']
    %7 = vsyncpa [#allocation3], 0
    %8 = vsyncpa [#allocation6], 0
    %9 = vsyncpa [#allocation4], 0
    // Predicated region
    $region2: #{tpu_custom_call.1} parent=1 // pred_check
      _
    $region3: #{tpu_custom_call.1} parent=1 // pred_check_branch
      %11 = sbr.rel (0) target = $region5
    $region4: #{tpu_custom_call.1} parent=1 // pred_region
      %s13 = ssub.s32 32, 32
      %14 = vsyncadd [#allocation3], %s13
      %s15 = sshll.u32 [#allocation2], 4
      %s16 = int_to_ptr.vmem [resolvable:$true] %s15
      %21 = dma.hbm_to_vmem [thread:$0]  %s0, 32, %s16, [#allocation3], 16, 16, 1
    $region5: #{tpu_custom_call.1} parent=1 // pred_fallthru
      _
    // Predicated region
    $region6: #{tpu_custom_call.1} parent=1 // pred_check
      _
    $region7: #{tpu_custom_call.1} parent=1 // pred_check_branch
      %23 = sbr.rel (0) target = $region9
    $region8: #{tpu_custom_call.1} parent=1 // pred_region
      %s25 = ssub.s32 256, 256
      %26 = vsyncadd [#allocation6], %s25
      %s27 = sshll.u32 [#allocation5], 4
      %s28 = int_to_ptr.vmem [resolvable:$true] %s27
      %33 = dma.hbm_to_vmem [thread:$0]  %s1, 256, %s28, [#allocation6], 128, 128, 8
    $region9: #{tpu_custom_call.1} parent=1 // pred_fallthru
      _
    // Predicated region
    $region10: #{tpu_custom_call.1} parent=1 // pred_check
      _
    $region11: #{tpu_custom_call.1} parent=1 // pred_check_branch
      %35 = sbr.rel (0) target = $region13
    $region12: #{tpu_custom_call.1} parent=1 // pred_region
      %36 = dma.done [#allocation3], 32
    $region13: #{tpu_custom_call.1} parent=1 // pred_fallthru
      _
    // Predicated region
    $region14: #{tpu_custom_call.1} parent=1 // pred_check
      _
    $region15: #{tpu_custom_call.1} parent=1 // pred_check_branch
      %38 = sbr.rel (0) target = $region17
    $region16: #{tpu_custom_call.1} parent=1 // pred_region
      %39 = dma.done [#allocation6], 256
    $region17: #{tpu_custom_call.1} parent=1 // pred_fallthru
      _
    %v40 = vld [vmem:[#allocation2] sm:$0x1]
    %v41 = vld [vmem:[#allocation2 + $0x1] sm:$0x1]
    %vm42 = vcmp.lt.f32.partialorder %v40, 0.7
    %vm43 = vcmp.lt.f32.partialorder %v41, 0.7
    %v44 = vsel %vm42, 1.4285715, 0.0
    %v45 = vsel %vm43, 1.4285715, 0.0
    %v46 = vld [vmem:[#allocation5] sm:$0xff]
    %v47 = vld [vmem:[#allocation5 + $0x8] sm:$0xff]
    %v50 = vlaneseq
    %v51 = vshrl.u32 %v50, 7
    %v52 = vsub.s32 0, %v51
    %v53 = vrot.slane %v44, %v52
    %v54 = vlaneseq
    %v55 = vshrl.u32 %v54, 7
    %v56 = vsub.s32 0, %v55
    %v57 = vrot.slane %v45, %v56
    %v60 = vmul.f32 %v46, %v53
    %v61 = vmul.f32 %v47, %v57
    %62 = vst [vmem:[#allocation7] sm:$0xff] %v60
    %63 = vst [vmem:[#allocation7 + $0x8] sm:$0xff] %v61
    // Predicated region
    $region18: #{tpu_custom_call.1} parent=1 // pred_check
      _
    $region19: #{tpu_custom_call.1} parent=1 // pred_check_branch
      %65 = sbr.rel (0) target = $region21
    $region20: #{tpu_custom_call.1} parent=1 // pred_region
      %s67 = ssub.s32 256, 256
      %68 = vsyncadd [#allocation4], %s67
      %s69 = sshll.u32 [#allocation7], 4
      %s70 = int_to_ptr.vmem [resolvable:$true] %s69
      %75 = dma.vmem_to_hbm [thread:$0]  %s70, 256, %s2, [#allocation4], 128, 128, 8
    $region21: #{tpu_custom_call.1} parent=1 // pred_fallthru
      _
    // Predicated region
    $region22: #{tpu_custom_call.1} parent=1 // pred_check
      _
    $region23: #{tpu_custom_call.1} parent=1 // pred_check_branch
      %77 = sbr.rel (0) target = $region25
    $region24: #{tpu_custom_call.1} parent=1 // pred_region
      %78 = dma.done [#allocation4], 256
    $region25: #{tpu_custom_call.1} parent=1 // pred_fallthru
      _
    %79 = vsyncpa [#allocation3], 1
    %80 = vsyncpa [#allocation6], 1
    %81 = vsyncpa [#allocation4], 1

</llo_original>
